<compile_context>
chip_gen: v5e
topology: v5e:2x2
jax: 0.10.0
libtpu: 0.0.40
codegen_flags: <defaults>
</compile_context>

<pallas_src>
import jax
import jax.numpy as jnp
from jax.experimental import pallas as pl
from jax.experimental.pallas import tpu as pltpu

DEPTH_EPS = 1e-3                       # target_points.ge(0.001)
_MAX_TILE_S = 2048                     # lane tile over flattened pixels (x128)
_ACC_BUDGET_BYTES = 4 * 1024 * 1024    # cap for the (Bt, P, TILE_S) f32 scratch


def _round_up(x, m):
    return (x + m - 1) // m * m


def _round_down_min(x, m):
    return max(m, x // m * m)


def _chamfer_kernel(centers_ref, tgt_ref, out_ref, acc_minx, acc_sumy, acc_cnty):
    # Grid = (batch_blocks, s_blocks). Accumulators are carried across the
    # (inner, "arbitrary") s axis and re-initialized at s == 0.
    s_idx = pl.program_id(1)
    n_s = pl.num_programs(1)

    @pl.when(s_idx == 0)
    def _init():
        acc_minx[...] = jnp.full_like(acc_minx, jnp.inf)
        acc_sumy[...] = jnp.zeros_like(acc_sumy)
        acc_cnty[...] = jnp.zeros_like(acc_cnty)

    c = centers_ref[...].astype(jnp.float32)          # (Bt, P, 1)
    t = tgt_ref[...].astype(jnp.float32)              # (Bt, 1, Ts) cast after DMA
    valid = t >= jnp.float32(DEPTH_EPS)               # (Bt, 1, Ts)

    d = (c - t) ** 2                                  # (Bt, P, Ts) squared L2 (D=1)

    # x -> y: element-wise running min over pixel tiles (invalid pixels -> +inf).
    d_x = jnp.where(valid, d, jnp.float32(jnp.inf))
    acc_minx[...] = jnp.minimum(acc_minx[...], d_x)

    # y -> x: per-pixel min over bin centers; masked running sum + valid count.
    min_b = jnp.min(d, axis=1, keepdims=True)         # (Bt, 1, Ts)
    acc_sumy[...] = acc_sumy[...] + jnp.where(valid, min_b, 0.0)
    acc_cnty[...] = acc_cnty[...] + valid.astype(jnp.float32)

    @pl.when(s_idx == n_s - 1)
    def _finalize():
        p = acc_minx.shape[1]
        n_valid = jnp.sum(acc_cnty[...], axis=2, keepdims=True)       # (Bt,1,1)
        has_valid = n_valid > 0.0
        min_x = jnp.min(acc_minx[...], axis=2, keepdims=True)         # (Bt,P,1)
        # TODO(synk): samples with zero valid pixels are zeroed here; pytorch3d's
        # chamfer_distance handles fully-empty clouds slightly differently.
        cham_x = jnp.sum(jnp.where(has_valid, min_x, 0.0),
                         axis=1, keepdims=True) / jnp.float32(p)      # (Bt,1,1)
        cham_y = jnp.sum(acc_sumy[...], axis=2, keepdims=True) / jnp.maximum(
            n_valid, 1.0)                                             # (Bt,1,1)
        out_ref[...] = cham_x + cham_y


def bins_chamfer_loss(bins, target_depth_maps):
    """Pallas implementation of BinsChamferLoss.forward."""
    n, pp1 = bins.shape
    p = pp1 - 1

    # Bin centers computed once in the wrapper (removes the offset-by-1 sublane
    # slice from every kernel iteration). Tiny (N, P) tensor.
    centers = (0.5 * (bins[:, 1:] + bins[:, :-1])).astype(jnp.float32)
    centers = centers.reshape(n, p, 1)

    # Keep depth maps in their native dtype; the f32 cast happens in-kernel.
    tgt = target_depth_maps.reshape(n, 1, -1)
    s = tgt.shape[-1]

    # Lane-aligned pixel tile, sized so the (Bt, P, TILE_S) accumulator is small.
    tile_s = min(_MAX_TILE_S, _round_up(s, 128))
    if p * tile_s * 4 > _ACC_BUDGET_BYTES:
        tile_s = _round_down_min(_ACC_BUDGET_BYTES // (4 * p), 128)
    s_pad = _round_up(s, tile_s)
    if s_pad != s:
        # Zero-padded pixels have depth < DEPTH_EPS and are masked out in-kernel.
        tgt = jnp.pad(tgt, ((0, 0), (0, 0), (0, s_pad - s)))

    # Batch Bt samples per grid step (amortizes per-step overhead for small
    # images) while keeping the accumulator within budget. Bt divides N.
    bt = 1
    for cand in range(min(n, 8), 0, -1):
        if n % cand == 0 and cand * p * tile_s * 4 <= _ACC_BUDGET_BYTES:
            bt = cand
            break

    grid = (n // bt, s_pad // tile_s)

    per_sample = pl.pallas_call(
        _chamfer_kernel,
        out_shape=jax.ShapeDtypeStruct((n, 1, 1), jnp.float32),
        grid_spec=pltpu.PrefetchScalarGridSpec(
            num_scalar_prefetch=0,
            grid=grid,
            in_specs=[
                pl.BlockSpec((bt, p, 1), lambda b, si: (b, 0, 0)),
                pl.BlockSpec((bt, 1, tile_s), lambda b, si: (b, 0, si)),
            ],
            out_specs=pl.BlockSpec((bt, 1, 1), lambda b, si: (b, 0, 0)),
            scratch_shapes=[
                pltpu.VMEM((bt, p, tile_s), jnp.float32),   # running min (x->y)
                pltpu.VMEM((bt, 1, tile_s), jnp.float32),   # running sum  (y->x)
                pltpu.VMEM((bt, 1, tile_s), jnp.float32),   # running valid count
            ],
        ),
        compiler_params=pltpu.CompilerParams(
            dimension_semantics=("parallel", "arbitrary"),
            vmem_limit_bytes=32 * 1024 * 1024,
        ),
    )(centers, tgt)

    # batch_reduction="mean" over the N samples (tiny glue reduction).
    return jnp.mean(per_sample)


def _reference(bins, target_depth_maps):
    """Pure-JAX reference mirroring the PyTorch/pytorch3d semantics."""
    c = 0.5 * (bins[:, 1:] + bins[:, :-1])                         # (N, P)
    t = target_depth_maps.reshape(target_depth_maps.shape[0], -1)  # (N, S)
    valid = t >= DEPTH_EPS
    d = (c[:, :, None] - t[:, None, :]) ** 2                       # (N, P, S)
    d_x = jnp.where(valid[:, None, :], d, jnp.inf)
    cham_x = jnp.sum(jnp.min(d_x, axis=2), axis=1) / c.shape[1]
    min_b = jnp.min(d, axis=1)                                     # (N, S)
    nv = jnp.sum(valid, axis=1).astype(jnp.float32)
    cham_y = jnp.sum(jnp.where(valid, min_b, 0.0), axis=1) / jnp.maximum(nv, 1.0)
    return jnp.mean(cham_x + cham_y)


if __name__ == "__main__":
    key = jax.random.PRNGKey(0)
    k_bins, k_tgt = jax.random.split(key)

    # bins: (N, P+1) bin edges; target depth maps: NCHW.
    bins = jax.random.uniform(
        k_bins, (2, 17), dtype=jnp.float32, minval=0.1, maxval=10.0
    )
    target_depth_maps = jax.random.uniform(
        k_tgt, (2, 4, 16, 16), dtype=jnp.float32, minval=0.0, maxval=10.0
    )

    loss = jax.block_until_ready(bins_chamfer_loss(bins, target_depth_maps))
    ref = jax.block_until_ready(_reference(bins, target_depth_maps))

    assert jnp.isfinite(loss), "loss is not finite"
    assert jnp.allclose(loss, ref, rtol=1e-5, atol=1e-5), (loss, ref)
    print("KERNEL_OK")
</pallas_src>

<mosaic_0001>
module attributes {stable_mosaic.version = 11 : i64} {
  func.func @_chamfer_kernel(%arg0: i32, %arg1: i32, %arg2: memref<2x16x1xf32, #tpu.memory_space<vmem>>, %arg3: memref<2x1x1024xf32, #tpu.memory_space<vmem>>, %arg4: memref<2x1x1xf32, #tpu.memory_space<vmem>>, %arg5: memref<2x16x1024xf32, #tpu.memory_space<vmem>>, %arg6: memref<2x1x1024xf32, #tpu.memory_space<vmem>>, %arg7: memref<2x1x1024xf32, #tpu.memory_space<vmem>>) attributes {dimension_semantics = [#tpu.dimension_semantics<parallel>, #tpu.dimension_semantics<arbitrary>], iteration_bounds = array<i64: 1, 1>, scalar_prefetch = 0 : i64, scratch_operands = 3 : i64, tpu.core_type = #tpu.core_type<tc>, window_params = [{transform_indices = @transform_0, window_bounds = array<i64: 2, 16, 1>}, {transform_indices = @transform_1, window_bounds = array<i64: 2, 1, 1024>}, {transform_indices = @transform_2, window_bounds = array<i64: 2, 1, 1>}]} {
    %c0_i32 = arith.constant 0 : i32
    %0 = arith.cmpi eq, %arg1, %c0_i32 : i32
    %1 = arith.extui %0 : i1 to i32
    %c0_i32_0 = arith.constant 0 : i32
    %2 = arith.cmpi ne, %1, %c0_i32_0 : i32
    scf.if %2 {
      %cst_29 = arith.constant 0x7F800000 : f32
      %33 = vector.broadcast %cst_29 : f32 to vector<2x16x1024xf32>
      %c0_30 = arith.constant 0 : index
      %c0_31 = arith.constant 0 : index
      %c0_32 = arith.constant 0 : index
      %34 = vector.load %arg5[%c0_30, %c0_31, %c0_32] : memref<2x16x1024xf32, #tpu.memory_space<vmem>>, vector<2x16x1024xf32>
      tpu.vector_store %arg5[%c0_30, %c0_31, %c0_32], %33 {strides = array<i32>} : memref<2x16x1024xf32, #tpu.memory_space<vmem>>, vector<2x16x1024xf32>,
      %cst_33 = arith.constant 0.000000e+00 : f32
      %35 = vector.broadcast %cst_33 : f32 to vector<2x1x1024xf32>
      %c0_34 = arith.constant 0 : index
      %c0_35 = arith.constant 0 : index
      %c0_36 = arith.constant 0 : index
      %36 = vector.load %arg6[%c0_34, %c0_35, %c0_36] : memref<2x1x1024xf32, #tpu.memory_space<vmem>>, vector<2x1x1024xf32>
      tpu.vector_store %arg6[%c0_34, %c0_35, %c0_36], %35 {strides = array<i32>} : memref<2x1x1024xf32, #tpu.memory_space<vmem>>, vector<2x1x1024xf32>,
      %cst_37 = arith.constant 0.000000e+00 : f32
      %37 = vector.broadcast %cst_37 : f32 to vector<2x1x1024xf32>
      %c0_38 = arith.constant 0 : index
      %c0_39 = arith.constant 0 : index
      %c0_40 = arith.constant 0 : index
      %38 = vector.load %arg7[%c0_38, %c0_39, %c0_40] : memref<2x1x1024xf32, #tpu.memory_space<vmem>>, vector<2x1x1024xf32>
      tpu.vector_store %arg7[%c0_38, %c0_39, %c0_40], %37 {strides = array<i32>} : memref<2x1x1024xf32, #tpu.memory_space<vmem>>, vector<2x1x1024xf32>,
    } else {
    }
    %c0 = arith.constant 0 : index
    %c0_1 = arith.constant 0 : index
    %c0_2 = arith.constant 0 : index
    %3 = vector.load %arg2[%c0, %c0_1, %c0_2] : memref<2x16x1xf32, #tpu.memory_space<vmem>>, vector<2x16x1xf32>
    %c0_3 = arith.constant 0 : index
    %c0_4 = arith.constant 0 : index
    %c0_5 = arith.constant 0 : index
    %4 = vector.load %arg3[%c0_3, %c0_4, %c0_5] : memref<2x1x1024xf32, #tpu.memory_space<vmem>>, vector<2x1x1024xf32>
    %cst = arith.constant 1.000000e-03 : f32
    %5 = vector.broadcast %cst : f32 to vector<2x1x1024xf32>
    %6 = arith.cmpf oge, %4, %5 : vector<2x1x1024xf32>
    %7 = vector.broadcast %3 : vector<2x16x1xf32> to vector<2x16x1024xf32>
    %8 = vector.broadcast %4 : vector<2x1x1024xf32> to vector<2x16x1024xf32>
    %9 = arith.subf %7, %8 : vector<2x16x1024xf32>
    %10 = arith.mulf %9, %9 : vector<2x16x1024xf32>
    %cst_6 = arith.constant 0x7F800000 : f32
    %11 = vector.shape_cast %6 : vector<2x1x1024xi1> to vector<2x1x1024xi1>
    %12 = vector.broadcast %11 : vector<2x1x1024xi1> to vector<2x16x1024xi1>
    %13 = vector.broadcast %cst_6 : f32 to vector<2x16x1024xf32>
    %14 = arith.select %12, %10, %13 : vector<2x16x1024xi1>, vector<2x16x1024xf32>
    %c0_7 = arith.constant 0 : index
    %c0_8 = arith.constant 0 : index
    %c0_9 = arith.constant 0 : index
    %15 = vector.load %arg5[%c0_7, %c0_8, %c0_9] : memref<2x16x1024xf32, #tpu.memory_space<vmem>>, vector<2x16x1024xf32>
    %16 = arith.minimumf %15, %14 : vector<2x16x1024xf32>
    %c0_10 = arith.constant 0 : index
    %c0_11 = arith.constant 0 : index
    %c0_12 = arith.constant 0 : index
    %17 = vector.load %arg5[%c0_10, %c0_11, %c0_12] : memref<2x16x1024xf32, #tpu.memory_space<vmem>>, vector<2x16x1024xf32>
    tpu.vector_store %arg5[%c0_10, %c0_11, %c0_12], %16 {strides = array<i32>} : memref<2x16x1024xf32, #tpu.memory_space<vmem>>, vector<2x16x1024xf32>,
    %cst_13 = arith.constant dense<0x7F800000> : vector<2x1024xf32>
    %18 = vector.multi_reduction <minimumf>, %10, %cst_13 [1] : vector<2x16x1024xf32> to vector<2x1024xf32>
    %19 = vector.shape_cast %18 : vector<2x1024xf32> to vector<2x1x1024xf32>
    %c0_14 = arith.constant 0 : index
    %c0_15 = arith.constant 0 : index
    %c0_16 = arith.constant 0 : index
    %20 = vector.load %arg6[%c0_14, %c0_15, %c0_16] : memref<2x1x1024xf32, #tpu.memory_space<vmem>>, vector<2x1x1024xf32>
    %cst_17 = arith.constant 0.000000e+00 : f32
    %21 = vector.broadcast %cst_17 : f32 to vector<2x1x1024xf32>
    %22 = arith.select %6, %19, %21 : vector<2x1x1024xi1>, vector<2x1x1024xf32>
    %23 = arith.addf %20, %22 : vector<2x1x1024xf32>
    %c0_18 = arith.constant 0 : index
    %c0_19 = arith.constant 0 : index
    %c0_20 = arith.constant 0 : index
    %24 = vector.load %arg6[%c0_18, %c0_19, %c0_20] : memref<2x1x1024xf32, #tpu.memory_space<vmem>>, vector<2x1x1024xf32>
    tpu.vector_store %arg6[%c0_18, %c0_19, %c0_20], %23 {strides = array<i32>} : memref<2x1x1024xf32, #tpu.memory_space<vmem>>, vector<2x1x1024xf32>,
    %c0_21 = arith.constant 0 : index
    %c0_22 = arith.constant 0 : index
    %c0_23 = arith.constant 0 : index
    %25 = vector.load %arg7[%c0_21, %c0_22, %c0_23] : memref<2x1x1024xf32, #tpu.memory_space<vmem>>, vector<2x1x1024xf32>
    %26 = arith.extui %6 : vector<2x1x1024xi1> to vector<2x1x1024xi32>
    %27 = arith.sitofp %26 : vector<2x1x1024xi32> to vector<2x1x1024xf32>
    %28 = arith.addf %25, %27 : vector<2x1x1024xf32>
    %c0_24 = arith.constant 0 : index
    %c0_25 = arith.constant 0 : index
    %c0_26 = arith.constant 0 : index
    %29 = vector.load %arg7[%c0_24, %c0_25, %c0_26] : memref<2x1x1024xf32, #tpu.memory_space<vmem>>, vector<2x1x1024xf32>
    tpu.vector_store %arg7[%c0_24, %c0_25, %c0_26], %28 {strides = array<i32>} : memref<2x1x1024xf32, #tpu.memory_space<vmem>>, vector<2x1x1024xf32>,
    %c0_i32_27 = arith.constant 0 : i32
    %30 = arith.cmpi eq, %arg1, %c0_i32_27 : i32
    %31 = arith.extui %30 : i1 to i32
    %c0_i32_28 = arith.constant 0 : i32
    %32 = arith.cmpi ne, %31, %c0_i32_28 : i32
    scf.if %32 {
      %c0_29 = arith.constant 0 : index
      %c0_30 = arith.constant 0 : index
      %c0_31 = arith.constant 0 : index
      %33 = vector.load %arg7[%c0_29, %c0_30, %c0_31] : memref<2x1x1024xf32, #tpu.memory_space<vmem>>, vector<2x1x1024xf32>
      %cst_32 = arith.constant dense<0.000000e+00> : vector<2x1xf32>
      %34 = vector.multi_reduction <add>, %33, %cst_32 [2] : vector<2x1x1024xf32> to vector<2x1xf32>
      %35 = vector.shape_cast %34 : vector<2x1xf32> to vector<2x1x1xf32>
      %cst_33 = arith.constant 0.000000e+00 : f32
      %36 = vector.broadcast %cst_33 : f32 to vector<2x1x1xf32>
      %37 = arith.cmpf ogt, %35, %36 : vector<2x1x1xf32>
      %c0_34 = arith.constant 0 : index
      %c0_35 = arith.constant 0 : index
      %c0_36 = arith.constant 0 : index
      %38 = vector.load %arg5[%c0_34, %c0_35, %c0_36] : memref<2x16x1024xf32, #tpu.memory_space<vmem>>, vector<2x16x1024xf32>
      %cst_37 = arith.constant dense<0x7F800000> : vector<2x16xf32>
      %39 = vector.multi_reduction <minimumf>, %38, %cst_37 [2] : vector<2x16x1024xf32> to vector<2x16xf32>
      %40 = vector.shape_cast %39 : vector<2x16xf32> to vector<2x16x1xf32>
      %cst_38 = arith.constant 0.000000e+00 : f32
      %41 = vector.shape_cast %37 : vector<2x1x1xi1> to vector<2x1x1xi1>
      %42 = vector.broadcast %41 : vector<2x1x1xi1> to vector<2x16x1xi1>
      %43 = vector.broadcast %cst_38 : f32 to vector<2x16x1xf32>
      %44 = arith.select %42, %40, %43 : vector<2x16x1xi1>, vector<2x16x1xf32>
      %cst_39 = arith.constant dense<0.000000e+00> : vector<2x1xf32>
      %45 = vector.multi_reduction <add>, %44, %cst_39 [1] : vector<2x16x1xf32> to vector<2x1xf32>
      %46 = vector.shape_cast %45 : vector<2x1xf32> to vector<2x1x1xf32>
      %cst_40 = arith.constant 1.600000e+01 : f32
      %47 = vector.broadcast %cst_40 : f32 to vector<2x1x1xf32>
      %48 = arith.divf %46, %47 : vector<2x1x1xf32>
      %c0_41 = arith.constant 0 : index
      %c0_42 = arith.constant 0 : index
      %c0_43 = arith.constant 0 : index
      %49 = vector.load %arg6[%c0_41, %c0_42, %c0_43] : memref<2x1x1024xf32, #tpu.memory_space<vmem>>, vector<2x1x1024xf32>
      %cst_44 = arith.constant dense<0.000000e+00> : vector<2x1xf32>
      %50 = vector.multi_reduction <add>, %49, %cst_44 [2] : vector<2x1x1024xf32> to vector<2x1xf32>
      %51 = vector.shape_cast %50 : vector<2x1xf32> to vector<2x1x1xf32>
      %cst_45 = arith.constant 1.000000e+00 : f32
      %52 = vector.broadcast %cst_45 : f32 to vector<2x1x1xf32>
      %53 = arith.maximumf %35, %52 : vector<2x1x1xf32>
      %54 = arith.divf %51, %53 : vector<2x1x1xf32>
      %55 = arith.addf %48, %54 : vector<2x1x1xf32>
      %c0_46 = arith.constant 0 : index
      %c0_47 = arith.constant 0 : index
      %c0_48 = arith.constant 0 : index
      %56 = vector.load %arg4[%c0_46, %c0_47, %c0_48] : memref<2x1x1xf32, #tpu.memory_space<vmem>>, vector<2x1x1xf32>
      tpu.vector_store %arg4[%c0_46, %c0_47, %c0_48], %55 {strides = array<i32>} : memref<2x1x1xf32, #tpu.memory_space<vmem>>, vector<2x1x1xf32>,
    } else {
    }
    return
  }
  func.func @transform_0(%arg0: i32, %arg1: i32) -> (i32, i32, i32) {
    %c0_i32 = arith.constant 0 : i32
    %c0_i32_0 = arith.constant 0 : i32
    %c0_i32_1 = arith.constant 0 : i32
    return %arg0, %c0_i32, %c0_i32_0 : i32, i32, i32
  }
  func.func @transform_1(%arg0: i32, %arg1: i32) -> (i32, i32, i32) {
    %c0_i32 = arith.constant 0 : i32
    %c0_i32_0 = arith.constant 0 : i32
    return %arg0, %c0_i32, %arg1 : i32, i32, i32
  }
  func.func @transform_2(%arg0: i32, %arg1: i32) -> (i32, i32, i32) {
    %c0_i32 = arith.constant 0 : i32
    %c0_i32_0 = arith.constant 0 : i32
    %c0_i32_1 = arith.constant 0 : i32
    return %arg0, %c0_i32, %c0_i32_0 : i32, i32, i32
  }
}

</mosaic_0001>

<llo_original>
// kernel: tpu_custom_call.1
$region0: #{tpu_custom_call.1}
  #allocation0 [shape = 'u32[]', space=smem, size = 0x4, offset = 0x4, fixed_abs, tag = 'smem constant byte address 0x4 - core index']
  #allocation1 [shape = 'u32[72,128]{1,0:T(1,128)}', space=vmem, size = 0x9000, scoped, tag = 'internal scratch']
  #allocation2 [shape = 'f32[2,16,1024]{2,1,0:T(8,128)}', space=vmem, size = 0x20000, scoped, tag = 'scratch operand']
  #allocation3 [shape = 'f32[2,1,1024]{2,1,0:T(1,128)}', space=vmem, size = 0x2000, scoped, tag = 'scratch operand']
  #allocation4 [shape = 'f32[2,1,1024]{2,1,0:T(1,128)}', space=vmem, size = 0x2000, scoped, tag = 'scratch operand']
  %s0 = inlined_call_operand.vmem [shape: f32[2,16,1], index: 0, kind: input, shape index: {}]
  %s1 = inlined_call_operand.vmem [shape: f32[2,1,1024], index: 1, kind: input, shape index: {}]
  %s2 = inlined_call_operand.vmem [shape: f32[2,1,1], index: 2, kind: output, shape index: {}]
  %s3 = sld [smem:[#allocation0]]
  $region26: #{tpu_custom_call.1} parent=0
    _
  %s5 = ssub.s32 1, %s3
  %s6 = scalar_select 0, %s5, %s3
  // Predicated region
  $region2: #{tpu_custom_call.1} parent=0 // pred_check
    _
  $region3: #{tpu_custom_call.1} parent=0 // pred_check_branch
    %8 = sbr.rel (0) target = $region5
  $region4: #{tpu_custom_call.1} parent=0 // pred_region
    _
  $region5: #{tpu_custom_call.1} parent=0 // pred_fallthru
    _
  // Predicated region
  $region6: #{tpu_custom_call.1} parent=0 // pred_check
    _
  $region7: #{tpu_custom_call.1} parent=0 // pred_check_branch
    %10 = sbr.rel (0) target = $region9
  $region8: #{tpu_custom_call.1} parent=0 // pred_region
    _
  $region9: #{tpu_custom_call.1} parent=0 // pred_fallthru
    _
  %p11 = scmp.eq.s32.totalorder 0, 0
  // Predicated region
  $region10: #{tpu_custom_call.1} parent=0 // pred_check
    %p12 = pneg %p11
  $region11: #{tpu_custom_call.1} parent=0 // pred_check_branch
    %14 = sbr.rel (%p12) target = $region13
  $region12: #{tpu_custom_call.1} parent=0 // pred_region
    %15 = vst [vmem:[#allocation2] sm:$0xff] inf
    %16 = vst [vmem:[#allocation2 + $0x8] sm:$0xff] inf
    %17 = vst [vmem:[#allocation2 + $0x10] sm:$0xff] inf
    %18 = vst [vmem:[#allocation2 + $0x18] sm:$0xff] inf
    %19 = vst [vmem:[#allocation2 + $0x20] sm:$0xff] inf
    %20 = vst [vmem:[#allocation2 + $0x28] sm:$0xff] inf
    %21 = vst [vmem:[#allocation2 + $0x30] sm:$0xff] inf
    %22 = vst [vmem:[#allocation2 + $0x38] sm:$0xff] inf
    %23 = vst [vmem:[#allocation2 + $0x40] sm:$0xff] inf
    %24 = vst [vmem:[#allocation2 + $0x48] sm:$0xff] inf
    %25 = vst [vmem:[#allocation2 + $0x50] sm:$0xff] inf
    %26 = vst [vmem:[#allocation2 + $0x58] sm:$0xff] inf
    %27 = vst [vmem:[#allocation2 + $0x60] sm:$0xff] inf
    %28 = vst [vmem:[#allocation2 + $0x68] sm:$0xff] inf
    %29 = vst [vmem:[#allocation2 + $0x70] sm:$0xff] inf
    %30 = vst [vmem:[#allocation2 + $0x78] sm:$0xff] inf
    %31 = vst [vmem:[#allocation2 + $0x80] sm:$0xff] inf
    %32 = vst [vmem:[#allocation2 + $0x88] sm:$0xff] inf
    %33 = vst [vmem:[#allocation2 + $0x90] sm:$0xff] inf
    %34 = vst [vmem:[#allocation2 + $0x98] sm:$0xff] inf
    %35 = vst [vmem:[#allocation2 + $0xa0] sm:$0xff] inf
    %36 = vst [vmem:[#allocation2 + $0xa8] sm:$0xff] inf
    %37 = vst [vmem:[#allocation2 + $0xb0] sm:$0xff] inf
    %38 = vst [vmem:[#allocation2 + $0xb8] sm:$0xff] inf
    %39 = vst [vmem:[#allocation2 + $0xc0] sm:$0xff] inf
    %40 = vst [vmem:[#allocation2 + $0xc8] sm:$0xff] inf
    %41 = vst [vmem:[#allocation2 + $0xd0] sm:$0xff] inf
    %42 = vst [vmem:[#allocation2 + $0xd8] sm:$0xff] inf
    %43 = vst [vmem:[#allocation2 + $0xe0] sm:$0xff] inf
    %44 = vst [vmem:[#allocation2 + $0xe8] sm:$0xff] inf
    %45 = vst [vmem:[#allocation2 + $0xf0] sm:$0xff] inf
    %46 = vst [vmem:[#allocation2 + $0xf8] sm:$0xff] inf
    %47 = vst [vmem:[#allocation3] sm:$0xff] 0.0
    %48 = vst [vmem:[#allocation3 + $0x8] sm:$0xff] 0.0
    %49 = vst [vmem:[#allocation4] sm:$0xff] 0.0
    %50 = vst [vmem:[#allocation4 + $0x8] sm:$0xff] 0.0
  $region13: #{tpu_custom_call.1} parent=0 // pred_fallthru
    _
  %v51 = vld [vmem:[%s0] sm:$0xff]
  %v52 = vld [vmem:[%s0 + $0x8] sm:$0xff]
  %v53 = vld [vmem:[%s0 + $0x10] sm:$0xff]
  %v54 = vld [vmem:[%s0 + $0x18] sm:$0xff]
  %v55 = vld [vmem:[%s1] sm:$0xff]
  %v56 = vld [vmem:[%s1 + $0x8] sm:$0xff]
  %vm57 = vcmp.ge.f32.partialorder %v55, 0.001
  %vm58 = vcmp.ge.f32.partialorder %v56, 0.001
  %60 = vset.pattern.permute.xlu0 0
  %61 = vperm.xlu0 %60, %v51
  %v62 = vpop.permute.xlu0 %61
  %65 = vset.pattern.permute.xlu0 0
  %66 = vperm.xlu0 %65, %v52
  %v67 = vpop.permute.xlu0 %66
  %70 = vset.pattern.permute.xlu0 0
  %71 = vperm.xlu0 %70, %v53
  %v72 = vpop.permute.xlu0 %71
  %75 = vset.pattern.permute.xlu0 0
  %76 = vperm.xlu0 %75, %v54
  %v77 = vpop.permute.xlu0 %76
  %v81 = vperm.slane %v55, 0
  %v82 = vperm.slane %v55, 1
  %v83 = vperm.slane %v55, 2
  %v84 = vperm.slane %v55, 3
  %v85 = vperm.slane %v55, 4
  %v86 = vperm.slane %v55, 5
  %v87 = vperm.slane %v55, 6
  %v88 = vperm.slane %v55, 7
  %v89 = vperm.slane %v56, 0
  %v90 = vperm.slane %v56, 1
  %v91 = vperm.slane %v56, 2
  %v92 = vperm.slane %v56, 3
  %v93 = vperm.slane %v56, 4
  %v94 = vperm.slane %v56, 5
  %v95 = vperm.slane %v56, 6
  %v96 = vperm.slane %v56, 7
  %v113 = vsub.f32 %v62, %v81
  %v114 = vsub.f32 %v62, %v82
  %v115 = vsub.f32 %v62, %v83
  %v116 = vsub.f32 %v62, %v84
  %v117 = vsub.f32 %v62, %v85
  %v118 = vsub.f32 %v62, %v86
  %v119 = vsub.f32 %v62, %v87
  %v120 = vsub.f32 %v62, %v88
  %v121 = vsub.f32 %v67, %v81
  %v122 = vsub.f32 %v67, %v82
  %v123 = vsub.f32 %v67, %v83
  %v124 = vsub.f32 %v67, %v84
  %v125 = vsub.f32 %v67, %v85
  %v126 = vsub.f32 %v67, %v86
  %v127 = vsub.f32 %v67, %v87
  %v128 = vsub.f32 %v67, %v88
  %v129 = vsub.f32 %v72, %v89
  %v130 = vsub.f32 %v72, %v90
  %v131 = vsub.f32 %v72, %v91
  %v132 = vsub.f32 %v72, %v92
  %v133 = vsub.f32 %v72, %v93
  %v134 = vsub.f32 %v72, %v94
  %v135 = vsub.f32 %v72, %v95
  %v136 = vsub.f32 %v72, %v96
  %v137 = vsub.f32 %v77, %v89
  %v138 = vsub.f32 %v77, %v90
  %v139 = vsub.f32 %v77, %v91
  %v140 = vsub.f32 %v77, %v92
  %v141 = vsub.f32 %v77, %v93
  %v142 = vsub.f32 %v77, %v94
  %v143 = vsub.f32 %v77, %v95
  %v144 = vsub.f32 %v77, %v96
  %v145 = vmul.f32 %v113, %v113
  %v146 = vmul.f32 %v114, %v114
  %v147 = vmul.f32 %v115, %v115
  %v148 = vmul.f32 %v116, %v116
  %v149 = vmul.f32 %v117, %v117
  %v150 = vmul.f32 %v118, %v118
  %v151 = vmul.f32 %v119, %v119
  %v152 = vmul.f32 %v120, %v120
  %v153 = vmul.f32 %v121, %v121
  %v154 = vmul.f32 %v122, %v122
  %v155 = vmul.f32 %v123, %v123
  %v156 = vmul.f32 %v124, %v124
  %v157 = vmul.f32 %v125, %v125
  %v158 = vmul.f32 %v126, %v126
  %v159 = vmul.f32 %v127, %v127
  %v160 = vmul.f32 %v128, %v128
  %v161 = vmul.f32 %v129, %v129
  %v162 = vmul.f32 %v130, %v130
  %v163 = vmul.f32 %v131, %v131
  %v164 = vmul.f32 %v132, %v132
  %v165 = vmul.f32 %v133, %v133
  %v166 = vmul.f32 %v134, %v134
  %v167 = vmul.f32 %v135, %v135
  %v168 = vmul.f32 %v136, %v136
  %v169 = vmul.f32 %v137, %v137
  %v170 = vmul.f32 %v138, %v138
  %v171 = vmul.f32 %v139, %v139
  %v172 = vmul.f32 %v140, %v140
  %v173 = vmul.f32 %v141, %v141
  %v174 = vmul.f32 %v142, %v142
  %v175 = vmul.f32 %v143, %v143
  %v176 = vmul.f32 %v144, %v144
  %v177 = vsel %vm57, 1, 0
  %v178 = vsel %vm58, 1, 0
  %v179 = vperm.slane %v177, 0
  %v180 = vperm.slane %v177, 1
  %v181 = vperm.slane %v177, 2
  %v182 = vperm.slane %v177, 3
  %v183 = vperm.slane %v177, 4
  %v184 = vperm.slane %v177, 5
  %v185 = vperm.slane %v177, 6
  %v186 = vperm.slane %v177, 7
  %v187 = vperm.slane %v178, 0
  %v188 = vperm.slane %v178, 1
  %v189 = vperm.slane %v178, 2
  %v190 = vperm.slane %v178, 3
  %v191 = vperm.slane %v178, 4
  %v192 = vperm.slane %v178, 5
  %v193 = vperm.slane %v178, 6
  %v194 = vperm.slane %v178, 7
  %vm195 = vcmp.eq.s32.totalorder %v179, 1
  %vm196 = vcmp.eq.s32.totalorder %v180, 1
  %vm197 = vcmp.eq.s32.totalorder %v181, 1
  %vm198 = vcmp.eq.s32.totalorder %v182, 1
  %vm199 = vcmp.eq.s32.totalorder %v183, 1
  %vm200 = vcmp.eq.s32.totalorder %v184, 1
  %vm201 = vcmp.eq.s32.totalorder %v185, 1
  %vm202 = vcmp.eq.s32.totalorder %v186, 1
  %vm203 = vcmp.eq.s32.totalorder %v187, 1
  %vm204 = vcmp.eq.s32.totalorder %v188, 1
  %vm205 = vcmp.eq.s32.totalorder %v189, 1
  %vm206 = vcmp.eq.s32.totalorder %v190, 1
  %vm207 = vcmp.eq.s32.totalorder %v191, 1
  %vm208 = vcmp.eq.s32.totalorder %v192, 1
  %vm209 = vcmp.eq.s32.totalorder %v193, 1
  %vm210 = vcmp.eq.s32.totalorder %v194, 1
  %v211 = vsel %vm195, %v145, inf
  %v212 = vsel %vm196, %v146, inf
  %v213 = vsel %vm197, %v147, inf
  %v214 = vsel %vm198, %v148, inf
  %v215 = vsel %vm199, %v149, inf
  %v216 = vsel %vm200, %v150, inf
  %v217 = vsel %vm201, %v151, inf
  %v218 = vsel %vm202, %v152, inf
  %v219 = vsel %vm195, %v153, inf
  %v220 = vsel %vm196, %v154, inf
  %v221 = vsel %vm197, %v155, inf
  %v222 = vsel %vm198, %v156, inf
  %v223 = vsel %vm199, %v157, inf
  %v224 = vsel %vm200, %v158, inf
  %v225 = vsel %vm201, %v159, inf
  %v226 = vsel %vm202, %v160, inf
  %v227 = vsel %vm203, %v161, inf
  %v228 = vsel %vm204, %v162, inf
  %v229 = vsel %vm205, %v163, inf
  %v230 = vsel %vm206, %v164, inf
  %v231 = vsel %vm207, %v165, inf
  %v232 = vsel %vm208, %v166, inf
  %v233 = vsel %vm209, %v167, inf
  %v234 = vsel %vm210, %v168, inf
  %v235 = vsel %vm203, %v169, inf
  %v236 = vsel %vm204, %v170, inf
  %v237 = vsel %vm205, %v171, inf
  %v238 = vsel %vm206, %v172, inf
  %v239 = vsel %vm207, %v173, inf
  %v240 = vsel %vm208, %v174, inf
  %v241 = vsel %vm209, %v175, inf
  %v242 = vsel %vm210, %v176, inf
  %v243 = vld [vmem:[#allocation2] sm:$0xff]
  %v244 = vld [vmem:[#allocation2 + $0x8] sm:$0xff]
  %v245 = vld [vmem:[#allocation2 + $0x10] sm:$0xff]
  %v246 = vld [vmem:[#allocation2 + $0x18] sm:$0xff]
  %v247 = vld [vmem:[#allocation2 + $0x20] sm:$0xff]
  %v248 = vld [vmem:[#allocation2 + $0x28] sm:$0xff]
  %v249 = vld [vmem:[#allocation2 + $0x30] sm:$0xff]
  %v250 = vld [vmem:[#allocation2 + $0x38] sm:$0xff]
  %v251 = vld [vmem:[#allocation2 + $0x40] sm:$0xff]
  %v252 = vld [vmem:[#allocation2 + $0x48] sm:$0xff]
  %v253 = vld [vmem:[#allocation2 + $0x50] sm:$0xff]
  %v254 = vld [vmem:[#allocation2 + $0x58] sm:$0xff]
  %v255 = vld [vmem:[#allocation2 + $0x60] sm:$0xff]
  %v256 = vld [vmem:[#allocation2 + $0x68] sm:$0xff]
  %v257 = vld [vmem:[#allocation2 + $0x70] sm:$0xff]
  %v258 = vld [vmem:[#allocation2 + $0x78] sm:$0xff]
  %v259 = vld [vmem:[#allocation2 + $0x80] sm:$0xff]
  %v260 = vld [vmem:[#allocation2 + $0x88] sm:$0xff]
  %v261 = vld [vmem:[#allocation2 + $0x90] sm:$0xff]
  %v262 = vld [vmem:[#allocation2 + $0x98] sm:$0xff]
  %v263 = vld [vmem:[#allocation2 + $0xa0] sm:$0xff]
  %v264 = vld [vmem:[#allocation2 + $0xa8] sm:$0xff]
  %v265 = vld [vmem:[#allocation2 + $0xb0] sm:$0xff]
  %v266 = vld [vmem:[#allocation2 + $0xb8] sm:$0xff]
  %v267 = vld [vmem:[#allocation2 + $0xc0] sm:$0xff]
  %v268 = vld [vmem:[#allocation2 + $0xc8] sm:$0xff]
  %v269 = vld [vmem:[#allocation2 + $0xd0] sm:$0xff]
  %v270 = vld [vmem:[#allocation2 + $0xd8] sm:$0xff]
  %v271 = vld [vmem:[#allocation2 + $0xe0] sm:$0xff]
  %v272 = vld [vmem:[#allocation2 + $0xe8] sm:$0xff]
  %v273 = vld [vmem:[#allocation2 + $0xf0] sm:$0xff]
  %v274 = vld [vmem:[#allocation2 + $0xf8] sm:$0xff]
  %v275 = vmin.f32 %v243, %v211
  %v276 = vmin.f32 %v244, %v212
  %v277 = vmin.f32 %v245, %v213
  %v278 = vmin.f32 %v246, %v214
  %v279 = vmin.f32 %v247, %v215
  %v280 = vmin.f32 %v248, %v216
  %v281 = vmin.f32 %v249, %v217
  %v282 = vmin.f32 %v250, %v218
  %v283 = vmin.f32 %v251, %v219
  %v284 = vmin.f32 %v252, %v220
  %v285 = vmin.f32 %v253, %v221
  %v286 = vmin.f32 %v254, %v222
  %v287 = vmin.f32 %v255, %v223
  %v288 = vmin.f32 %v256, %v224
  %v289 = vmin.f32 %v257, %v225
  %v290 = vmin.f32 %v258, %v226
  %v291 = vmin.f32 %v259, %v227
  %v292 = vmin.f32 %v260, %v228
  %v293 = vmin.f32 %v261, %v229
  %v294 = vmin.f32 %v262, %v230
  %v295 = vmin.f32 %v263, %v231
  %v296 = vmin.f32 %v264, %v232
  %v297 = vmin.f32 %v265, %v233
  %v298 = vmin.f32 %v266, %v234
  %v299 = vmin.f32 %v267, %v235
  %v300 = vmin.f32 %v268, %v236
  %v301 = vmin.f32 %v269, %v237
  %v302 = vmin.f32 %v270, %v238
  %v303 = vmin.f32 %v271, %v239
  %v304 = vmin.f32 %v272, %v240
  %v305 = vmin.f32 %v273, %v241
  %v306 = vmin.f32 %v274, %v242
  %307 = vst [vmem:[#allocation2] sm:$0xff] %v275
  %308 = vst [vmem:[#allocation2 + $0x8] sm:$0xff] %v276
  %309 = vst [vmem:[#allocation2 + $0x10] sm:$0xff] %v277
  %310 = vst [vmem:[#allocation2 + $0x18] sm:$0xff] %v278
  %311 = vst [vmem:[#allocation2 + $0x20] sm:$0xff] %v279
  %312 = vst [vmem:[#allocation2 + $0x28] sm:$0xff] %v280
  %313 = vst [vmem:[#allocation2 + $0x30] sm:$0xff] %v281
  %314 = vst [vmem:[#allocation2 + $0x38] sm:$0xff] %v282
  %315 = vst [vmem:[#allocation2 + $0x40] sm:$0xff] %v283
  %316 = vst [vmem:[#allocation2 + $0x48] sm:$0xff] %v284
  %317 = vst [vmem:[#allocation2 + $0x50] sm:$0xff] %v285
  %318 = vst [vmem:[#allocation2 + $0x58] sm:$0xff] %v286
  %319 = vst [vmem:[#allocation2 + $0x60] sm:$0xff] %v287
  %320 = vst [vmem:[#allocation2 + $0x68] sm:$0xff] %v288
  %321 = vst [vmem:[#allocation2 + $0x70] sm:$0xff] %v289
  %322 = vst [vmem:[#allocation2 + $0x78] sm:$0xff] %v290
  %323 = vst [vmem:[#allocation2 + $0x80] sm:$0xff] %v291
  %324 = vst [vmem:[#allocation2 + $0x88] sm:$0xff] %v292
  %325 = vst [vmem:[#allocation2 + $0x90] sm:$0xff] %v293
  %326 = vst [vmem:[#allocation2 + $0x98] sm:$0xff] %v294
  %327 = vst [vmem:[#allocation2 + $0xa0] sm:$0xff] %v295
  %328 = vst [vmem:[#allocation2 + $0xa8] sm:$0xff] %v296
  %329 = vst [vmem:[#allocation2 + $0xb0] sm:$0xff] %v297
  %330 = vst [vmem:[#allocation2 + $0xb8] sm:$0xff] %v298
  %331 = vst [vmem:[#allocation2 + $0xc0] sm:$0xff] %v299
  %332 = vst [vmem:[#allocation2 + $0xc8] sm:$0xff] %v300
  %333 = vst [vmem:[#allocation2 + $0xd0] sm:$0xff] %v301
  %334 = vst [vmem:[#allocation2 + $0xd8] sm:$0xff] %v302
  %335 = vst [vmem:[#allocation2 + $0xe0] sm:$0xff] %v303
  %336 = vst [vmem:[#allocation2 + $0xe8] sm:$0xff] %v304
  %337 = vst [vmem:[#allocation2 + $0xf0] sm:$0xff] %v305
  %338 = vst [vmem:[#allocation2 + $0xf8] sm:$0xff] %v306
  %v339 = vmin.f32 %v145, %v153
  %v340 = vrot.slane %v339, 4
  %v341 = vmin.f32 %v339, %v340
  %v342 = vrot.slane %v341, 2
  %v343 = vmin.f32 %v341, %v342
  %v344 = vrot.slane %v343, 1
  %v345 = vmin.f32 %v343, %v344
  %v346 = vmin.f32 %v146, %v154
  %v347 = vrot.slane %v346, 4
  %v348 = vmin.f32 %v346, %v347
  %v349 = vrot.slane %v348, 2
  %v350 = vmin.f32 %v348, %v349
  %v351 = vrot.slane %v350, 1
  %v352 = vmin.f32 %v350, %v351
  %v353 = vmin.f32 %v147, %v155
  %v354 = vrot.slane %v353, 4
  %v355 = vmin.f32 %v353, %v354
  %v356 = vrot.slane %v355, 2
  %v357 = vmin.f32 %v355, %v356
  %v358 = vrot.slane %v357, 1
  %v359 = vmin.f32 %v357, %v358
  %v360 = vmin.f32 %v148, %v156
  %v361 = vrot.slane %v360, 4
  %v362 = vmin.f32 %v360, %v361
  %v363 = vrot.slane %v362, 2
  %v364 = vmin.f32 %v362, %v363
  %v365 = vrot.slane %v364, 1
  %v366 = vmin.f32 %v364, %v365
  %v367 = vmin.f32 %v149, %v157
  %v368 = vrot.slane %v367, 4
  %v369 = vmin.f32 %v367, %v368
  %v370 = vrot.slane %v369, 2
  %v371 = vmin.f32 %v369, %v370
  %v372 = vrot.slane %v371, 1
  %v373 = vmin.f32 %v371, %v372
  %v374 = vmin.f32 %v150, %v158
  %v375 = vrot.slane %v374, 4
  %v376 = vmin.f32 %v374, %v375
  %v377 = vrot.slane %v376, 2
  %v378 = vmin.f32 %v376, %v377
  %v379 = vrot.slane %v378, 1
  %v380 = vmin.f32 %v378, %v379
  %v381 = vmin.f32 %v151, %v159
  %v382 = vrot.slane %v381, 4
  %v383 = vmin.f32 %v381, %v382
  %v384 = vrot.slane %v383, 2
  %v385 = vmin.f32 %v383, %v384
  %v386 = vrot.slane %v385, 1
  %v387 = vmin.f32 %v385, %v386
  %v388 = vmin.f32 %v152, %v160
  %v389 = vrot.slane %v388, 4
  %v390 = vmin.f32 %v388, %v389
  %v391 = vrot.slane %v390, 2
  %v392 = vmin.f32 %v390, %v391
  %v393 = vrot.slane %v392, 1
  %v394 = vmin.f32 %v392, %v393
  %v395 = vmin.f32 %v161, %v169
  %v396 = vrot.slane %v395, 4
  %v397 = vmin.f32 %v395, %v396
  %v398 = vrot.slane %v397, 2
  %v399 = vmin.f32 %v397, %v398
  %v400 = vrot.slane %v399, 1
  %v401 = vmin.f32 %v399, %v400
  %v402 = vmin.f32 %v162, %v170
  %v403 = vrot.slane %v402, 4
  %v404 = vmin.f32 %v402, %v403
  %v405 = vrot.slane %v404, 2
  %v406 = vmin.f32 %v404, %v405
  %v407 = vrot.slane %v406, 1
  %v408 = vmin.f32 %v406, %v407
  %v409 = vmin.f32 %v163, %v171
  %v410 = vrot.slane %v409, 4
  %v411 = vmin.f32 %v409, %v410
  %v412 = vrot.slane %v411, 2
  %v413 = vmin.f32 %v411, %v412
  %v414 = vrot.slane %v413, 1
  %v415 = vmin.f32 %v413, %v414
  %v416 = vmin.f32 %v164, %v172
  %v417 = vrot.slane %v416, 4
  %v418 = vmin.f32 %v416, %v417
  %v419 = vrot.slane %v418, 2
  %v420 = vmin.f32 %v418, %v419
  %v421 = vrot.slane %v420, 1
  %v422 = vmin.f32 %v420, %v421
  %v423 = vmin.f32 %v165, %v173
  %v424 = vrot.slane %v423, 4
  %v425 = vmin.f32 %v423, %v424
  %v426 = vrot.slane %v425, 2
  %v427 = vmin.f32 %v425, %v426
  %v428 = vrot.slane %v427, 1
  %v429 = vmin.f32 %v427, %v428
  %v430 = vmin.f32 %v166, %v174
  %v431 = vrot.slane %v430, 4
  %v432 = vmin.f32 %v430, %v431
  %v433 = vrot.slane %v432, 2
  %v434 = vmin.f32 %v432, %v433
  %v435 = vrot.slane %v434, 1
  %v436 = vmin.f32 %v434, %v435
  %v437 = vmin.f32 %v167, %v175
  %v438 = vrot.slane %v437, 4
  %v439 = vmin.f32 %v437, %v438
  %v440 = vrot.slane %v439, 2
  %v441 = vmin.f32 %v439, %v440
  %v442 = vrot.slane %v441, 1
  %v443 = vmin.f32 %v441, %v442
  %v444 = vmin.f32 %v168, %v176
  %v445 = vrot.slane %v444, 4
  %v446 = vmin.f32 %v444, %v445
  %v447 = vrot.slane %v446, 2
  %v448 = vmin.f32 %v446, %v447
  %v449 = vrot.slane %v448, 1
  %v450 = vmin.f32 %v448, %v449
  %v451 = vld [vmem:[#allocation3] sm:$0xff]
  %v452 = vld [vmem:[#allocation3 + $0x8] sm:$0xff]
  %v469 = vrot.slane %v352, 7
  %v470 = vrot.slane %v359, 6
  %v471 = vrot.slane %v366, 5
  %v472 = vrot.slane %v373, 4
  %v473 = vrot.slane %v380, 3
  %v474 = vrot.slane %v387, 2
  %v475 = vrot.slane %v394, 1
  %v476 = vrot.slane %v408, 7
  %v477 = vrot.slane %v415, 6
  %v478 = vrot.slane %v422, 5
  %v479 = vrot.slane %v429, 4
  %v480 = vrot.slane %v436, 3
  %v481 = vrot.slane %v443, 2
  %v482 = vrot.slane %v450, 1
  %vm483 = vcmask 1040384
  %v484 = vsel %vm483, %v345, %v469
  %vm485 = vcmask 1042434
  %v486 = vsel %vm485, %v470, %v471
  %vm487 = vcmask 1041408
  %v488 = vsel %vm487, %v484, %v486
  %vm489 = vcmask 1044484
  %v490 = vsel %vm489, %v472, %v473
  %vm491 = vcmask 1046534
  %v492 = vsel %vm491, %v474, %v475
  %vm493 = vcmask 1045508
  %v494 = vsel %vm493, %v490, %v492
  %vm495 = vcmask 1043456
  %v496 = vsel %vm495, %v488, %v494
  %v497 = vsel %vm483, %v401, %v476
  %v498 = vsel %vm485, %v477, %v478
  %v499 = vsel %vm487, %v497, %v498
  %v500 = vsel %vm489, %v479, %v480
  %v501 = vsel %vm491, %v481, %v482
  %v502 = vsel %vm493, %v500, %v501
  %v503 = vsel %vm495, %v499, %v502
  %v506 = vsel %vm57, %v496, 0.0
  %v507 = vsel %vm58, %v503, 0.0
  %v508 = vadd.f32 %v451, %v506
  %v509 = vadd.f32 %v452, %v507
  %510 = vst [vmem:[#allocation3] sm:$0xff] %v508
  %511 = vst [vmem:[#allocation3 + $0x8] sm:$0xff] %v509
  %v512 = vld [vmem:[#allocation4] sm:$0xff]
  %v513 = vld [vmem:[#allocation4 + $0x8] sm:$0xff]
  %v514 = vcvt.s32.f32 %v177
  %v515 = vcvt.s32.f32 %v178
  %v516 = vadd.f32 %v512, %v514
  %v517 = vadd.f32 %v513, %v515
  %518 = vst [vmem:[#allocation4] sm:$0xff] %v516
  %519 = vst [vmem:[#allocation4 + $0x8] sm:$0xff] %v517
  // Predicated region
  $region14: #{tpu_custom_call.1} parent=0 // pred_check
    %p520 = pneg %p11
  $region15: #{tpu_custom_call.1} parent=0 // pred_check_branch
    %522 = sbr.rel (%p520) target = $region17
  $region16: #{tpu_custom_call.1} parent=0 // pred_region
    %v523 = vld [vmem:[#allocation4] sm:$0xff]
    %v524 = vld [vmem:[#allocation4 + $0x8] sm:$0xff]
    %v527 = vperm.slane %v523, 0
    %v528 = vperm.slane %v523, 1
    %v529 = vperm.slane %v523, 2
    %v530 = vperm.slane %v523, 3
    %v531 = vperm.slane %v523, 4
    %v532 = vperm.slane %v523, 5
    %v533 = vperm.slane %v523, 6
    %v534 = vperm.slane %v523, 7
    %v535 = vperm.slane %v524, 0
    %v536 = vperm.slane %v524, 1
    %v537 = vperm.slane %v524, 2
    %v538 = vperm.slane %v524, 3
    %v539 = vperm.slane %v524, 4
    %v540 = vperm.slane %v524, 5
    %v541 = vperm.slane %v524, 6
    %v542 = vperm.slane %v524, 7
    %v559 = vsel %vm483, %v527, 0.0
    %v560 = vsel %vm483, %v528, 0.0
    %v561 = vadd.f32 %v559, %v560
    %v562 = vsel %vm483, %v529, 0.0
    %v563 = vadd.f32 %v561, %v562
    %v564 = vsel %vm483, %v530, 0.0
    %v565 = vadd.f32 %v563, %v564
    %v566 = vsel %vm483, %v531, 0.0
    %v567 = vadd.f32 %v565, %v566
    %v568 = vsel %vm483, %v532, 0.0
    %v569 = vadd.f32 %v567, %v568
    %v570 = vsel %vm483, %v533, 0.0
    %v571 = vadd.f32 %v569, %v570
    %v572 = vsel %vm483, %v534, 0.0
    %v573 = vadd.f32 %v571, %v572
    %574 = vadd.xlane.f32.xlu0 %v573
    %v575 = vpop.xlane.xlu0 %574
    %v576 = vsel %vm483, %v535, 0.0
    %v577 = vsel %vm483, %v536, 0.0
    %v578 = vadd.f32 %v576, %v577
    %v579 = vsel %vm483, %v537, 0.0
    %v580 = vadd.f32 %v578, %v579
    %v581 = vsel %vm483, %v538, 0.0
    %v582 = vadd.f32 %v580, %v581
    %v583 = vsel %vm483, %v539, 0.0
    %v584 = vadd.f32 %v582, %v583
    %v585 = vsel %vm483, %v540, 0.0
    %v586 = vadd.f32 %v584, %v585
    %v587 = vsel %vm483, %v541, 0.0
    %v588 = vadd.f32 %v586, %v587
    %v589 = vsel %vm483, %v542, 0.0
    %v590 = vadd.f32 %v588, %v589
    %591 = vadd.xlane.f32.xlu0 %v590
    %v592 = vpop.xlane.xlu0 %591
    %vm593 = vcmp.gt.f32.partialorder %v575, 0.0
    %vm594 = vcmp.gt.f32.partialorder %v592, 0.0
    %v595 = vld [vmem:[#allocation2] sm:$0xff]
    %v596 = vld [vmem:[#allocation2 + $0x8] sm:$0xff]
    %v597 = vld [vmem:[#allocation2 + $0x10] sm:$0xff]
    %v598 = vld [vmem:[#allocation2 + $0x18] sm:$0xff]
    %v599 = vld [vmem:[#allocation2 + $0x20] sm:$0xff]
    %v600 = vld [vmem:[#allocation2 + $0x28] sm:$0xff]
    %v601 = vld [vmem:[#allocation2 + $0x30] sm:$0xff]
    %v602 = vld [vmem:[#allocation2 + $0x38] sm:$0xff]
    %v603 = vld [vmem:[#allocation2 + $0x40] sm:$0xff]
    %v604 = vld [vmem:[#allocation2 + $0x48] sm:$0xff]
    %v605 = vld [vmem:[#allocation2 + $0x50] sm:$0xff]
    %v606 = vld [vmem:[#allocation2 + $0x58] sm:$0xff]
    %v607 = vld [vmem:[#allocation2 + $0x60] sm:$0xff]
    %v608 = vld [vmem:[#allocation2 + $0x68] sm:$0xff]
    %v609 = vld [vmem:[#allocation2 + $0x70] sm:$0xff]
    %v610 = vld [vmem:[#allocation2 + $0x78] sm:$0xff]
    %v611 = vld [vmem:[#allocation2 + $0x80] sm:$0xff]
    %v612 = vld [vmem:[#allocation2 + $0x88] sm:$0xff]
    %v613 = vld [vmem:[#allocation2 + $0x90] sm:$0xff]
    %v614 = vld [vmem:[#allocation2 + $0x98] sm:$0xff]
    %v615 = vld [vmem:[#allocation2 + $0xa0] sm:$0xff]
    %v616 = vld [vmem:[#allocation2 + $0xa8] sm:$0xff]
    %v617 = vld [vmem:[#allocation2 + $0xb0] sm:$0xff]
    %v618 = vld [vmem:[#allocation2 + $0xb8] sm:$0xff]
    %v619 = vld [vmem:[#allocation2 + $0xc0] sm:$0xff]
    %v620 = vld [vmem:[#allocation2 + $0xc8] sm:$0xff]
    %v621 = vld [vmem:[#allocation2 + $0xd0] sm:$0xff]
    %v622 = vld [vmem:[#allocation2 + $0xd8] sm:$0xff]
    %v623 = vld [vmem:[#allocation2 + $0xe0] sm:$0xff]
    %v624 = vld [vmem:[#allocation2 + $0xe8] sm:$0xff]
    %v625 = vld [vmem:[#allocation2 + $0xf0] sm:$0xff]
    %v626 = vld [vmem:[#allocation2 + $0xf8] sm:$0xff]
    %v627 = vmin.f32 %v595, %v596
    %v628 = vmin.f32 %v627, %v597
    %v629 = vmin.f32 %v628, %v598
    %v630 = vmin.f32 %v629, %v599
    %v631 = vmin.f32 %v630, %v600
    %v632 = vmin.f32 %v631, %v601
    %v633 = vmin.f32 %v632, %v602
    %634 = vmin.xlane.f32.xlu0 %v633
    %v635 = vpop.xlane.xlu0 %634
    %v636 = vmin.f32 %v603, %v604
    %v637 = vmin.f32 %v636, %v605
    %v638 = vmin.f32 %v637, %v606
    %v639 = vmin.f32 %v638, %v607
    %v640 = vmin.f32 %v639, %v608
    %v641 = vmin.f32 %v640, %v609
    %v642 = vmin.f32 %v641, %v610
    %643 = vmin.xlane.f32.xlu0 %v642
    %v644 = vpop.xlane.xlu0 %643
    %v645 = vmin.f32 %v611, %v612
    %v646 = vmin.f32 %v645, %v613
    %v647 = vmin.f32 %v646, %v614
    %v648 = vmin.f32 %v647, %v615
    %v649 = vmin.f32 %v648, %v616
    %v650 = vmin.f32 %v649, %v617
    %v651 = vmin.f32 %v650, %v618
    %652 = vmin.xlane.f32.xlu0 %v651
    %v653 = vpop.xlane.xlu0 %652
    %v654 = vmin.f32 %v619, %v620
    %v655 = vmin.f32 %v654, %v621
    %v656 = vmin.f32 %v655, %v622
    %v657 = vmin.f32 %v656, %v623
    %v658 = vmin.f32 %v657, %v624
    %v659 = vmin.f32 %v658, %v625
    %v660 = vmin.f32 %v659, %v626
    %661 = vmin.xlane.f32.xlu0 %v660
    %v662 = vpop.xlane.xlu0 %661
    %v663 = vsel %vm593, 1, 0
    %v664 = vsel %vm594, 1, 0
    %v665 = vperm.slane %v663, 0
    %v666 = vperm.slane %v664, 0
    %vm667 = vcmp.eq.s32.totalorder %v665, 1
    %vm668 = vcmp.eq.s32.totalorder %v666, 1
    %v669 = vsel %vm667, %v635, 0.0
    %v670 = vsel %vm667, %v644, 0.0
    %v671 = vsel %vm668, %v653, 0.0
    %v672 = vsel %vm668, %v662, 0.0
    %v673 = vadd.f32 %v669, %v670
    %v674 = vrot.slane %v673, 4
    %v675 = vadd.f32 %v673, %v674
    %v676 = vrot.slane %v675, 2
    %v677 = vadd.f32 %v675, %v676
    %v678 = vrot.slane %v677, 1
    %v679 = vadd.f32 %v677, %v678
    %v680 = vadd.f32 %v671, %v672
    %v681 = vrot.slane %v680, 4
    %v682 = vadd.f32 %v680, %v681
    %v683 = vrot.slane %v682, 2
    %v684 = vadd.f32 %v682, %v683
    %v685 = vrot.slane %v684, 1
    %v686 = vadd.f32 %v684, %v685
    %v687 = vrcp.pop 16.0
    %v688 = vmul.f32 16.0, %v687
    %v689 = vsub.f32 1.0, %v688
    %v690 = vmul.f32 %v687, %v689
    %v691 = vadd.f32 %v687, %v690
    %vm692 = vweird.f32 %v687
    %v693 = vsel %vm692, %v687, %v691
    %v694 = vmul.f32 %v679, %v693
    %v695 = vmul.f32 %v686, %v693
    %v696 = vld [vmem:[#allocation3] sm:$0xff]
    %v697 = vld [vmem:[#allocation3 + $0x8] sm:$0xff]
    %v700 = vperm.slane %v696, 0
    %v701 = vperm.slane %v696, 1
    %v702 = vperm.slane %v696, 2
    %v703 = vperm.slane %v696, 3
    %v704 = vperm.slane %v696, 4
    %v705 = vperm.slane %v696, 5
    %v706 = vperm.slane %v696, 6
    %v707 = vperm.slane %v696, 7
    %v708 = vperm.slane %v697, 0
    %v709 = vperm.slane %v697, 1
    %v710 = vperm.slane %v697, 2
    %v711 = vperm.slane %v697, 3
    %v712 = vperm.slane %v697, 4
    %v713 = vperm.slane %v697, 5
    %v714 = vperm.slane %v697, 6
    %v715 = vperm.slane %v697, 7
    %v732 = vsel %vm483, %v700, 0.0
    %v733 = vsel %vm483, %v701, 0.0
    %v734 = vadd.f32 %v732, %v733
    %v735 = vsel %vm483, %v702, 0.0
    %v736 = vadd.f32 %v734, %v735
    %v737 = vsel %vm483, %v703, 0.0
    %v738 = vadd.f32 %v736, %v737
    %v739 = vsel %vm483, %v704, 0.0
    %v740 = vadd.f32 %v738, %v739
    %v741 = vsel %vm483, %v705, 0.0
    %v742 = vadd.f32 %v740, %v741
    %v743 = vsel %vm483, %v706, 0.0
    %v744 = vadd.f32 %v742, %v743
    %v745 = vsel %vm483, %v707, 0.0
    %v746 = vadd.f32 %v744, %v745
    %747 = vadd.xlane.f32.xlu0 %v746
    %v748 = vpop.xlane.xlu0 %747
    %v749 = vsel %vm483, %v708, 0.0
    %v750 = vsel %vm483, %v709, 0.0
    %v751 = vadd.f32 %v749, %v750
    %v752 = vsel %vm483, %v710, 0.0
    %v753 = vadd.f32 %v751, %v752
    %v754 = vsel %vm483, %v711, 0.0
    %v755 = vadd.f32 %v753, %v754
    %v756 = vsel %vm483, %v712, 0.0
    %v757 = vadd.f32 %v755, %v756
    %v758 = vsel %vm483, %v713, 0.0
    %v759 = vadd.f32 %v757, %v758
    %v760 = vsel %vm483, %v714, 0.0
    %v761 = vadd.f32 %v759, %v760
    %v762 = vsel %vm483, %v715, 0.0
    %v763 = vadd.f32 %v761, %v762
    %764 = vadd.xlane.f32.xlu0 %v763
    %v765 = vpop.xlane.xlu0 %764
    %v766 = vmax.f32 %v575, 1.0
    %v767 = vmax.f32 %v592, 1.0
    %v768 = vrcp.pop %v766
    %v769 = vmul.f32 %v766, %v768
    %v770 = vsub.f32 1.0, %v769
    %v771 = vmul.f32 %v768, %v770
    %v772 = vadd.f32 %v768, %v771
    %vm773 = vweird.f32 %v766
    %vm774 = vweird.f32 %v768
    %vm775 = vmor %vm773, %vm774
    %v776 = vsel %vm775, %v768, %v772
    %v777 = vand.u32 2147483647, %v766
    %vm778 = vcmp.eq.f32.partialorder %v777, 8.507059e+37
    %v779 = vand.u32 %v766, 2147483648
    %v780 = vor.u32 1.1754944e-38, %v779
    %v781 = vsel %vm778, %v780, %v776
    %v782 = vmul.f32 %v748, %v781
    %v783 = vrcp.pop %v767
    %v784 = vmul.f32 %v767, %v783
    %v785 = vsub.f32 1.0, %v784
    %v786 = vmul.f32 %v783, %v785
    %v787 = vadd.f32 %v783, %v786
    %vm788 = vweird.f32 %v767
    %vm789 = vweird.f32 %v783
    %vm790 = vmor %vm788, %vm789
    %v791 = vsel %vm790, %v783, %v787
    %v792 = vand.u32 2147483647, %v767
    %vm793 = vcmp.eq.f32.partialorder %v792, 8.507059e+37
    %v794 = vand.u32 %v767, 2147483648
    %v795 = vor.u32 1.1754944e-38, %v794
    %v796 = vsel %vm793, %v795, %v791
    %v797 = vmul.f32 %v765, %v796
    %v798 = vadd.f32 %v694, %v782
    %v799 = vadd.f32 %v695, %v797
    %vm800 = vcmask 0
    %801 = vst.msk [vmem:[%s2] sm:$0x1] %vm800, %v798
    %802 = vst.msk [vmem:[%s2 + $0x1] sm:$0x1] %vm800, %v799
  $region17: #{tpu_custom_call.1} parent=0 // pred_fallthru
    _
  // Predicated region
  $region18: #{tpu_custom_call.1} parent=0 // pred_check
    _
  $region19: #{tpu_custom_call.1} parent=0 // pred_check_branch
    %804 = sbr.rel (0) target = $region21
  $region20: #{tpu_custom_call.1} parent=0 // pred_region
    _
  $region21: #{tpu_custom_call.1} parent=0 // pred_fallthru
    _
  // Predicated region
  $region22: #{tpu_custom_call.1} parent=0 // pred_check
    _
  $region23: #{tpu_custom_call.1} parent=0 // pred_check_branch
    %806 = sbr.rel (0) target = $region25
  $region24: #{tpu_custom_call.1} parent=0 // pred_region
    _
  $region25: #{tpu_custom_call.1} parent=0 // pred_fallthru
    _

</llo_original>
